<compile_context>
chip_gen: v6e
topology: v6e:2x2x1
jax: 0.10.0
libtpu: 0.0.40
codegen_flags: <defaults>
</compile_context>

<pallas_src>
import jax
import jax.numpy as jnp
from jax.experimental import pallas as pl
from jax.experimental.pallas import tpu as pltpu


_SQRT_2_OVER_PI = 0.7978845608028654
_GELU_C1 = 0.044715

_MIN_VMEM = 16 << 20   # never below the smallest default scoped limit (v5e)
_MAX_VMEM = 64 << 20   # v7x physical VMEM per TensorCore


def _round_up(x, m):
    return ((x + m - 1) // m) * m


def _gelu_tanh(x):
    """tanh-approximate GELU (f32 math); x*x hoisted, tanh lands on the EUP."""
    x_sq = x * x
    inner = _SQRT_2_OVER_PI * x * (1.0 + _GELU_C1 * x_sq)
    return 0.5 * x * (1.0 + jnp.tanh(inner))


def _vmem_budget(n_bytes):
    return int(min(max(int(n_bytes * 1.5) + (2 << 20), _MIN_VMEM), _MAX_VMEM))


def _choose_block_rows(m, max_rows=512):
    """Multiple of 8, prefers divisors of m (no padding), >=2 grid steps."""
    if m <= 8:
        return max(m, 1)
    half = _round_up(pl.cdiv(m, 2), 8)          # at least 2 steps (v7x: 2 TCs)
    target = max(min(max_rows, half) // 8 * 8, 8)
    d = target
    while d >= 8:                               # prefer a divisor -> no pad/slice
        if m % d == 0:
            return d
        d -= 8
    return target


# -----------------------------------------------------------------------------
# Kernels
# -----------------------------------------------------------------------------
def _mlp_fused_kernel(x_ref, w1_ref, b1_ref, w2_ref, b2_ref, o_ref):
    """Fully fused MLP on one row tile; weights fully VMEM-resident.

    x_ref : (tm, Din)   [compute dtype, typically bf16]
    w1_ref: (Din, Dhid) w2_ref: (Dhid, Dout)   [compute dtype]
    b1_ref: (1, Dhid)   b2_ref: (1, Dout)      [f32]
    o_ref : (tm, Dout)
    """
    h = jnp.dot(x_ref[...], w1_ref[...], preferred_element_type=jnp.float32)
    h = _gelu_tanh(h + b1_ref[...])                       # f32 on VPU/EUP
    y = jnp.dot(h.astype(w2_ref.dtype), w2_ref[...],
                preferred_element_type=jnp.float32)
    o_ref[...] = (y + b2_ref[...]).astype(o_ref.dtype)


def _mlp_ktiled_kernel(x_ref, w1_ref, b1_ref, w2_ref, b2_ref, o_ref, acc_ref):
    """Hidden-dim tiled MLP (v7x / large-Dhid fallback).

    Per k-step: (tm, tk) slice of fc1 -> GELU -> partial fc2 accumulated in f32.
    x_ref : (tm, Din)  w1_ref: (Din, tk)  b1_ref: (1, tk)
    w2_ref: (tk, Dout) b2_ref: (1, Dout)  o_ref: (tm, Dout)  acc_ref: f32 scratch
    """
    k = pl.program_id(1)

    @pl.when(k == 0)
    def _():
        acc_ref[...] = jnp.zeros_like(acc_ref)

    h = jnp.dot(x_ref[...], w1_ref[...], preferred_element_type=jnp.float32)
    h = _gelu_tanh(h + b1_ref[...])
    acc_ref[...] += jnp.dot(h.astype(w2_ref.dtype), w2_ref[...],
                            preferred_element_type=jnp.float32)

    @pl.when(k == pl.num_programs(1) - 1)
    def _():
        o_ref[...] = (acc_ref[...] + b2_ref[...]).astype(o_ref.dtype)


# -----------------------------------------------------------------------------
# pallas_call builders
# -----------------------------------------------------------------------------
def _call_fused(x2, w1c, b1f, w2c, b2f, out_dtype, block_rows, single_buffer_weights):
    m, din = x2.shape
    dhid = w1c.shape[1]
    dout = w2c.shape[1]
    csize = jnp.dtype(x2.dtype).itemsize
    osize = jnp.dtype(out_dtype).itemsize
    nbuf_w = 1 if single_buffer_weights else 2

    need = (2 * block_rows * din * csize                   # x tiles (double-buffered)
            + 2 * block_rows * dout * osize                # out tiles
            + nbuf_w * (din * dhid + dhid * dout) * csize  # resident weights
            + nbuf_w * (dhid + dout) * 4                   # resident biases (f32)
            + block_rows * dhid * (4 + csize))             # hidden temp (f32 + bf16 copy)

    def resident(shape):
        # Constant index map -> block never changes; double-buffering is pure
        # VMEM waste, so request a single buffer.
        if single_buffer_weights:
            return pl.BlockSpec(shape, lambda i: (0, 0), pipeline_mode=pl.Buffered(1))
        return pl.BlockSpec(shape, lambda i: (0, 0))

    return pl.pallas_call(
        _mlp_fused_kernel,
        out_shape=jax.ShapeDtypeStruct((m, dout), out_dtype),
        grid_spec=pltpu.PrefetchScalarGridSpec(
            num_scalar_prefetch=0,
            grid=(m // block_rows,),
            in_specs=[
                pl.BlockSpec((block_rows, din), lambda i: (i, 0)),
                resident((din, dhid)),
                resident((1, dhid)),
                resident((dhid, dout)),
                resident((1, dout)),
            ],
            out_specs=pl.BlockSpec((block_rows, dout), lambda i: (i, 0)),
        ),
        compiler_params=pltpu.CompilerParams(
            dimension_semantics=("parallel",),
            vmem_limit_bytes=_vmem_budget(need)),
    )(x2, w1c, b1f, w2c, b2f)


def _call_ktiled(x2, w1c, b1f, w2c, b2f, out_dtype, block_rows, block_k):
    m, din = x2.shape
    dhid = w1c.shape[1]
    dout = w2c.shape[1]
    csize = jnp.dtype(x2.dtype).itemsize
    osize = jnp.dtype(out_dtype).itemsize

    need = (2 * block_rows * din * csize
            + 2 * block_rows * dout * osize
            + 2 * (din * block_k + block_k * dout) * csize   # streamed weight tiles
            + 2 * (block_k + dout) * 4
            + block_rows * dout * 4                          # f32 accumulator scratch
            + block_rows * block_k * (4 + csize))            # hidden slice temp

    return pl.pallas_call(
        _mlp_ktiled_kernel,
        out_shape=jax.ShapeDtypeStruct((m, dout), out_dtype),
        grid_spec=pltpu.PrefetchScalarGridSpec(
            num_scalar_prefetch=0,
            grid=(m // block_rows, dhid // block_k),
            in_specs=[
                pl.BlockSpec((block_rows, din), lambda i, k: (i, 0)),
                pl.BlockSpec((din, block_k), lambda i, k: (0, k)),
                pl.BlockSpec((1, block_k), lambda i, k: (0, k)),
                pl.BlockSpec((block_k, dout), lambda i, k: (k, 0)),
                pl.BlockSpec((1, dout), lambda i, k: (0, 0)),
            ],
            out_specs=pl.BlockSpec((block_rows, dout), lambda i, k: (i, 0)),
            scratch_shapes=[pltpu.VMEM((block_rows, dout), jnp.float32)],
        ),
        compiler_params=pltpu.CompilerParams(
            dimension_semantics=("parallel", "arbitrary"),
            vmem_limit_bytes=_vmem_budget(need)),
    )(x2, w1c, b1f, w2c, b2f)


# -----------------------------------------------------------------------------
# Wrapper
# -----------------------------------------------------------------------------
def mlp_forward(x, w1, b1, w2, b2, *, block_rows=None, compute_dtype=jnp.bfloat16,
                block_hidden=None, force_ktiled=False, max_block_rows=512):
    """x: (B, S, Din).  Weights are (in, out) layout, i.e. y = x @ W + b
    (equivalent to torch.nn.Linear's x @ W^T + b).  Matmul operands run in
    `compute_dtype` (default bf16) with f32 MXU accumulation.

    TODO(synk): for real models, store weights in bf16 and pad Dhid/Dout to
    multiples of 128 once at parameter-prep time (toy Dout=32 forces masked
    stores; unavoidable here).
    """
    B, S, Din = x.shape
    Dhid = w1.shape[1]
    Dout = w2.shape[1]
    out_dtype = x.dtype

    M = B * S
    x2 = x.reshape(M, Din).astype(compute_dtype)
    w1c = w1.astype(compute_dtype)
    w2c = w2.astype(compute_dtype)
    b1f = b1.reshape(1, Dhid).astype(jnp.float32)
    b2f = b2.reshape(1, Dout).astype(jnp.float32)

    if block_rows is None:
        block_rows = _choose_block_rows(M, max_block_rows)
    m_pad = _round_up(M, block_rows)
    if m_pad != M:
        # Rare: block_rows is chosen as a divisor of M whenever possible, so the
        # extra pad/slice HBM pass is usually avoided.
        x2 = jnp.pad(x2, ((0, m_pad - M), (0, 0)))

    csize = jnp.dtype(compute_dtype).itemsize
    # Pick between the fully-resident-weight fused path and the Dhid-tiled
    # fallback: keep the resident footprint well under v7x's 64 MiB VMEM.
    resident_bytes = ((Din * Dhid + Dhid * Dout) * csize
                      + block_rows * Dhid * (4 + csize))
    use_ktiled = force_ktiled or (resident_bytes > (40 << 20) and Dhid % 128 == 0)

    if use_ktiled:
        if block_hidden is None:
            block_hidden = 512 if Dhid % 512 == 0 else (256 if Dhid % 256 == 0 else 128)
        assert Dhid % block_hidden == 0 and block_hidden % 128 == 0
        out = _call_ktiled(x2, w1c, b1f, w2c, b2f, out_dtype, block_rows, block_hidden)
    else:
        try:
            out = _call_fused(x2, w1c, b1f, w2c, b2f, out_dtype, block_rows, True)
        except Exception:
            # TODO(synk): pl.Buffered(1) single-buffering unsupported on this jax
            # version; fall back to default double-buffered resident weights.
            out = _call_fused(x2, w1c, b1f, w2c, b2f, out_dtype, block_rows, False)

    if m_pad != M:
        out = out[:M]
    return out.reshape(B, S, Dout)


def mlp_reference(x, w1, b1, w2, b2, compute_dtype=None):
    """Pure-JAX reference mirroring the forward pass (Dropout p=0).  If
    compute_dtype is given, applies the same operand casts as the kernel."""
    cd = compute_dtype if compute_dtype is not None else x.dtype
    h = jnp.dot(x.astype(cd), w1.astype(cd), preferred_element_type=jnp.float32)
    h = _gelu_tanh(h + b1.astype(jnp.float32))
    y = jnp.dot(h.astype(cd), w2.astype(cd), preferred_element_type=jnp.float32)
    return y + b2.astype(jnp.float32)


if __name__ == "__main__":
    # --- Toy shapes consistent with the module: batch=2, seq=8 (n_patches+1),
    #     in=32, hidden=64, out=32.  Exercises the fused resident-weight path. ---
    B, S, Din, Dhid, Dout = 2, 8, 32, 64, 32
    kx, k1, k2, k3, k4 = jax.random.split(jax.random.PRNGKey(0), 5)
    x = jax.random.normal(kx, (B, S, Din), dtype=jnp.float32)
    w1 = jax.random.normal(k1, (Din, Dhid), dtype=jnp.float32) * 0.05
    b1 = jax.random.normal(k2, (Dhid,), dtype=jnp.float32) * 0.05
    w2 = jax.random.normal(k3, (Dhid, Dout), dtype=jnp.float32) * 0.05
    b2 = jax.random.normal(k4, (Dout,), dtype=jnp.float32) * 0.05

    out = jax.block_until_ready(mlp_forward(x, w1, b1, w2, b2))
    assert out.shape == (B, S, Dout)
    ref_bf16 = mlp_reference(x, w1, b1, w2, b2, compute_dtype=jnp.bfloat16)
    ref_f32 = mlp_reference(x, w1, b1, w2, b2)
    assert jnp.allclose(out, ref_bf16, atol=5e-3, rtol=5e-3), "mismatch vs bf16-matched ref"
    assert jnp.allclose(out, ref_f32, atol=3e-2, rtol=3e-2), "mismatch vs f32 ref"

    # --- Exercise the Dhid-tiled (v7x / large-hidden) fallback path at small,
    #     128-aligned dims: 128 -> 256 -> 128 with block_hidden=128 (2 k-steps). ---
    B2, S2, Din2, Dhid2, Dout2 = 2, 8, 128, 256, 128
    kx, k1, k2, k3, k4 = jax.random.split(jax.random.PRNGKey(1), 5)
    xb = jax.random.normal(kx, (B2, S2, Din2), dtype=jnp.float32)
    w1b = jax.random.normal(k1, (Din2, Dhid2), dtype=jnp.float32) * 0.05
    b1b = jax.random.normal(k2, (Dhid2,), dtype=jnp.float32) * 0.05
    w2b = jax.random.normal(k3, (Dhid2, Dout2), dtype=jnp.float32) * 0.05
    b2b = jax.random.normal(k4, (Dout2,), dtype=jnp.float32) * 0.05

    out_b = jax.block_until_ready(
        mlp_forward(xb, w1b, b1b, w2b, b2b, force_ktiled=True, block_hidden=128))
    ref_b = mlp_reference(xb, w1b, b1b, w2b, b2b, compute_dtype=jnp.bfloat16)
    assert out_b.shape == (B2, S2, Dout2)
    assert jnp.allclose(out_b, ref_b, atol=5e-3, rtol=5e-3), "mismatch (k-tiled path)"

    print("KERNEL_OK")
</pallas_src>

<mosaic_0001>
module attributes {stable_mosaic.version = 11 : i64} {
  func.func @_mlp_fused_kernel(%arg0: i32, %arg1: memref<8x32xbf16, #tpu.memory_space<vmem>>, %arg2: memref<32x64xbf16, #tpu.memory_space<vmem>>, %arg3: memref<1x64xf32, #tpu.memory_space<vmem>>, %arg4: memref<64x32xbf16, #tpu.memory_space<vmem>>, %arg5: memref<1x32xf32, #tpu.memory_space<vmem>>, %arg6: memref<8x32xf32, #tpu.memory_space<vmem>>) attributes {dimension_semantics = [#tpu.dimension_semantics<parallel>], iteration_bounds = array<i64: 2>, scalar_prefetch = 0 : i64, scratch_operands = 0 : i64, tpu.core_type = #tpu.core_type<tc>, window_params = [{transform_indices = @transform_0, window_bounds = array<i64: 8, 32>}, {pipeline_mode = #tpu.pipeline_mode<synchronous>, transform_indices = @transform_1, window_bounds = array<i64: 32, 64>}, {pipeline_mode = #tpu.pipeline_mode<synchronous>, transform_indices = @transform_2, window_bounds = array<i64: 1, 64>}, {pipeline_mode = #tpu.pipeline_mode<synchronous>, transform_indices = @transform_3, window_bounds = array<i64: 64, 32>}, {pipeline_mode = #tpu.pipeline_mode<synchronous>, transform_indices = @transform_4, window_bounds = array<i64: 1, 32>}, {transform_indices = @transform_5, window_bounds = array<i64: 8, 32>}]} {
    %c0 = arith.constant 0 : index
    %c0_0 = arith.constant 0 : index
    %0 = vector.load %arg1[%c0, %c0_0] : memref<8x32xbf16, #tpu.memory_space<vmem>>, vector<8x32xbf16>
    %c0_1 = arith.constant 0 : index
    %c0_2 = arith.constant 0 : index
    %1 = vector.load %arg2[%c0_1, %c0_2] : memref<32x64xbf16, #tpu.memory_space<vmem>>, vector<32x64xbf16>
    %cst = arith.constant dense<0.000000e+00> : vector<8x64xf32>
    %2 = tpu.matmul %0, %1, %cst {dimension_numbers = #tpu.dot_dimension_numbers<[1], [0], [0], [1], [0, 0, 1, 1], [], []>} : vector<8x32xbf16>, vector<32x64xbf16>, vector<8x64xf32> -> vector<8x64xf32>
    %c0_3 = arith.constant 0 : index
    %c0_4 = arith.constant 0 : index
    %3 = vector.load %arg3[%c0_3, %c0_4] : memref<1x64xf32, #tpu.memory_space<vmem>>, vector<1x64xf32>
    %4 = vector.broadcast %3 : vector<1x64xf32> to vector<8x64xf32>
    %5 = arith.addf %2, %4 : vector<8x64xf32>
    %6 = arith.mulf %5, %5 : vector<8x64xf32>
    %cst_5 = arith.constant 0.797884583 : f32
    %7 = vector.broadcast %cst_5 : f32 to vector<8x64xf32>
    %8 = arith.mulf %7, %5 : vector<8x64xf32>
    %cst_6 = arith.constant 4.471500e-02 : f32
    %9 = vector.broadcast %cst_6 : f32 to vector<8x64xf32>
    %10 = arith.mulf %9, %6 : vector<8x64xf32>
    %cst_7 = arith.constant 1.000000e+00 : f32
    %11 = vector.broadcast %cst_7 : f32 to vector<8x64xf32>
    %12 = arith.addf %11, %10 : vector<8x64xf32>
    %13 = arith.mulf %8, %12 : vector<8x64xf32>
    %cst_8 = arith.constant 5.000000e-01 : f32
    %14 = vector.broadcast %cst_8 : f32 to vector<8x64xf32>
    %15 = arith.mulf %14, %5 : vector<8x64xf32>
    %16 = math.tanh %13 : vector<8x64xf32>
    %cst_9 = arith.constant 1.000000e+00 : f32
    %17 = vector.broadcast %cst_9 : f32 to vector<8x64xf32>
    %18 = arith.addf %17, %16 : vector<8x64xf32>
    %19 = arith.mulf %15, %18 : vector<8x64xf32>
    %20 = arith.truncf %19 : vector<8x64xf32> to vector<8x64xbf16>
    %c0_10 = arith.constant 0 : index
    %c0_11 = arith.constant 0 : index
    %21 = vector.load %arg4[%c0_10, %c0_11] : memref<64x32xbf16, #tpu.memory_space<vmem>>, vector<64x32xbf16>
    %cst_12 = arith.constant dense<0.000000e+00> : vector<8x32xf32>
    %22 = tpu.matmul %20, %21, %cst_12 {dimension_numbers = #tpu.dot_dimension_numbers<[1], [0], [0], [1], [0, 0, 1, 1], [], []>} : vector<8x64xbf16>, vector<64x32xbf16>, vector<8x32xf32> -> vector<8x32xf32>
    %c0_13 = arith.constant 0 : index
    %c0_14 = arith.constant 0 : index
    %23 = vector.load %arg5[%c0_13, %c0_14] : memref<1x32xf32, #tpu.memory_space<vmem>>, vector<1x32xf32>
    %24 = vector.broadcast %23 : vector<1x32xf32> to vector<8x32xf32>
    %25 = arith.addf %22, %24 : vector<8x32xf32>
    %c0_15 = arith.constant 0 : index
    %c0_16 = arith.constant 0 : index
    %26 = vector.load %arg6[%c0_15, %c0_16] : memref<8x32xf32, #tpu.memory_space<vmem>>, vector<8x32xf32>
    tpu.vector_store %arg6[%c0_15, %c0_16], %25 {strides = array<i32>} : memref<8x32xf32, #tpu.memory_space<vmem>>, vector<8x32xf32>,
    return
  }
  func.func @transform_0(%arg0: i32) -> (i32, i32) {
    %c0_i32 = arith.constant 0 : i32
    %c0_i32_0 = arith.constant 0 : i32
    return %arg0, %c0_i32 : i32, i32
  }
  func.func @transform_1(%arg0: i32) -> (i32, i32) {
    %c0_i32 = arith.constant 0 : i32
    %c0_i32_0 = arith.constant 0 : i32
    %c0_i32_1 = arith.constant 0 : i32
    return %c0_i32, %c0_i32_0 : i32, i32
  }
  func.func @transform_2(%arg0: i32) -> (i32, i32) {
    %c0_i32 = arith.constant 0 : i32
    %c0_i32_0 = arith.constant 0 : i32
    %c0_i32_1 = arith.constant 0 : i32
    return %c0_i32, %c0_i32_0 : i32, i32
  }
  func.func @transform_3(%arg0: i32) -> (i32, i32) {
    %c0_i32 = arith.constant 0 : i32
    %c0_i32_0 = arith.constant 0 : i32
    %c0_i32_1 = arith.constant 0 : i32
    return %c0_i32, %c0_i32_0 : i32, i32
  }
  func.func @transform_4(%arg0: i32) -> (i32, i32) {
    %c0_i32 = arith.constant 0 : i32
    %c0_i32_0 = arith.constant 0 : i32
    %c0_i32_1 = arith.constant 0 : i32
    return %c0_i32, %c0_i32_0 : i32, i32
  }
  func.func @transform_5(%arg0: i32) -> (i32, i32) {
    %c0_i32 = arith.constant 0 : i32
    %c0_i32_0 = arith.constant 0 : i32
    return %arg0, %c0_i32 : i32, i32
  }
}

module attributes {stable_mosaic.version = 11 : i64} {
  func.func @_mlp_fused_kernel(%arg0: i32, %arg1: memref<8x32xbf16, #tpu.memory_space<vmem>>, %arg2: memref<32x64xbf16, #tpu.memory_space<vmem>>, %arg3: memref<1x64xf32, #tpu.memory_space<vmem>>, %arg4: memref<64x32xbf16, #tpu.memory_space<vmem>>, %arg5: memref<1x32xf32, #tpu.memory_space<vmem>>, %arg6: memref<8x32xf32, #tpu.memory_space<vmem>>) attributes {dimension_semantics = [#tpu.dimension_semantics<parallel>], iteration_bounds = array<i64: 2>, scalar_prefetch = 0 : i64, scratch_operands = 0 : i64, tpu.core_type = #tpu.core_type<tc>, window_params = [{transform_indices = @transform_0, window_bounds = array<i64: 8, 32>}, {pipeline_mode = #tpu.pipeline_mode<synchronous>, transform_indices = @transform_1, window_bounds = array<i64: 32, 64>}, {pipeline_mode = #tpu.pipeline_mode<synchronous>, transform_indices = @transform_2, window_bounds = array<i64: 1, 64>}, {pipeline_mode = #tpu.pipeline_mode<synchronous>, transform_indices = @transform_3, window_bounds = array<i64: 64, 32>}, {pipeline_mode = #tpu.pipeline_mode<synchronous>, transform_indices = @transform_4, window_bounds = array<i64: 1, 32>}, {transform_indices = @transform_5, window_bounds = array<i64: 8, 32>}]} {
    %c0 = arith.constant 0 : index
    %c0_0 = arith.constant 0 : index
    %0 = vector.load %arg1[%c0, %c0_0] : memref<8x32xbf16, #tpu.memory_space<vmem>>, vector<8x32xbf16>
    %c0_1 = arith.constant 0 : index
    %c0_2 = arith.constant 0 : index
    %1 = vector.load %arg2[%c0_1, %c0_2] : memref<32x64xbf16, #tpu.memory_space<vmem>>, vector<32x64xbf16>
    %cst = arith.constant dense<0.000000e+00> : vector<8x64xf32>
    %2 = tpu.matmul %0, %1, %cst {dimension_numbers = #tpu.dot_dimension_numbers<[1], [0], [0], [1], [0, 0, 1, 1], [], []>} : vector<8x32xbf16>, vector<32x64xbf16>, vector<8x64xf32> -> vector<8x64xf32>
    %c0_3 = arith.constant 0 : index
    %c0_4 = arith.constant 0 : index
    %3 = vector.load %arg3[%c0_3, %c0_4] : memref<1x64xf32, #tpu.memory_space<vmem>>, vector<1x64xf32>
    %4 = vector.broadcast %3 : vector<1x64xf32> to vector<8x64xf32>
    %5 = arith.addf %2, %4 : vector<8x64xf32>
    %6 = arith.mulf %5, %5 : vector<8x64xf32>
    %cst_5 = arith.constant 0.797884583 : f32
    %7 = vector.broadcast %cst_5 : f32 to vector<8x64xf32>
    %8 = arith.mulf %7, %5 : vector<8x64xf32>
    %cst_6 = arith.constant 4.471500e-02 : f32
    %9 = vector.broadcast %cst_6 : f32 to vector<8x64xf32>
    %10 = arith.mulf %9, %6 : vector<8x64xf32>
    %cst_7 = arith.constant 1.000000e+00 : f32
    %11 = vector.broadcast %cst_7 : f32 to vector<8x64xf32>
    %12 = arith.addf %11, %10 : vector<8x64xf32>
    %13 = arith.mulf %8, %12 : vector<8x64xf32>
    %cst_8 = arith.constant 5.000000e-01 : f32
    %14 = vector.broadcast %cst_8 : f32 to vector<8x64xf32>
    %15 = arith.mulf %14, %5 : vector<8x64xf32>
    %16 = math.tanh %13 : vector<8x64xf32>
    %cst_9 = arith.constant 1.000000e+00 : f32
    %17 = vector.broadcast %cst_9 : f32 to vector<8x64xf32>
    %18 = arith.addf %17, %16 : vector<8x64xf32>
    %19 = arith.mulf %15, %18 : vector<8x64xf32>
    %20 = arith.truncf %19 : vector<8x64xf32> to vector<8x64xbf16>
    %c0_10 = arith.constant 0 : index
    %c0_11 = arith.constant 0 : index
    %21 = vector.load %arg4[%c0_10, %c0_11] : memref<64x32xbf16, #tpu.memory_space<vmem>>, vector<64x32xbf16>
    %cst_12 = arith.constant dense<0.000000e+00> : vector<8x32xf32>
    %22 = tpu.matmul %20, %21, %cst_12 {dimension_numbers = #tpu.dot_dimension_numbers<[1], [0], [0], [1], [0, 0, 1, 1], [], []>} : vector<8x64xbf16>, vector<64x32xbf16>, vector<8x32xf32> -> vector<8x32xf32>
    %c0_13 = arith.constant 0 : index
    %c0_14 = arith.constant 0 : index
    %23 = vector.load %arg5[%c0_13, %c0_14] : memref<1x32xf32, #tpu.memory_space<vmem>>, vector<1x32xf32>
    %24 = vector.broadcast %23 : vector<1x32xf32> to vector<8x32xf32>
    %25 = arith.addf %22, %24 : vector<8x32xf32>
    %c0_15 = arith.constant 0 : index
    %c0_16 = arith.constant 0 : index
    %26 = vector.load %arg6[%c0_15, %c0_16] : memref<8x32xf32, #tpu.memory_space<vmem>>, vector<8x32xf32>
    tpu.vector_store %arg6[%c0_15, %c0_16], %25 {strides = array<i32>} : memref<8x32xf32, #tpu.memory_space<vmem>>, vector<8x32xf32>,
    return
  }
  func.func @transform_0(%arg0: i32) -> (i32, i32) {
    %c0_i32 = arith.constant 0 : i32
    %c0_i32_0 = arith.constant 0 : i32
    return %arg0, %c0_i32 : i32, i32
  }
  func.func @transform_1(%arg0: i32) -> (i32, i32) {
    %c0_i32 = arith.constant 0 : i32
    %c0_i32_0 = arith.constant 0 : i32
    %c0_i32_1 = arith.constant 0 : i32
    return %c0_i32, %c0_i32_0 : i32, i32
  }
  func.func @transform_2(%arg0: i32) -> (i32, i32) {
    %c0_i32 = arith.constant 0 : i32
    %c0_i32_0 = arith.constant 0 : i32
    %c0_i32_1 = arith.constant 0 : i32
    return %c0_i32, %c0_i32_0 : i32, i32
  }
  func.func @transform_3(%arg0: i32) -> (i32, i32) {
    %c0_i32 = arith.constant 0 : i32
    %c0_i32_0 = arith.constant 0 : i32
    %c0_i32_1 = arith.constant 0 : i32
    return %c0_i32, %c0_i32_0 : i32, i32
  }
  func.func @transform_4(%arg0: i32) -> (i32, i32) {
    %c0_i32 = arith.constant 0 : i32
    %c0_i32_0 = arith.constant 0 : i32
    %c0_i32_1 = arith.constant 0 : i32
    return %c0_i32, %c0_i32_0 : i32, i32
  }
  func.func @transform_5(%arg0: i32) -> (i32, i32) {
    %c0_i32 = arith.constant 0 : i32
    %c0_i32_0 = arith.constant 0 : i32
    return %arg0, %c0_i32 : i32, i32
  }
}

</mosaic_0001>

<llo_original>
// kernel: tpu_custom_call.1
$region0: #{tpu_custom_call.1}
  #allocation0 [shape = 'u32[]', space=smem, size = 0x4, offset = 0x4, fixed_abs, tag = 'smem constant byte address 0x4 - core index']
  #allocation1 [shape = 'u32[144,128]{1,0:T(1,128)}', space=vmem, size = 0x12000, scoped, tag = 'internal scratch']
  %s0 = inlined_call_operand.vmem [shape: bf16[16,32], index: 0, kind: input, shape index: {}]
  %s1 = inlined_call_operand.vmem [shape: bf16[32,64], index: 1, kind: input, shape index: {}]
  %s2 = inlined_call_operand.vmem [shape: f32[1,64], index: 2, kind: input, shape index: {}]
  %s3 = inlined_call_operand.vmem [shape: bf16[64,32], index: 3, kind: input, shape index: {}]
  %s4 = inlined_call_operand.vmem [shape: f32[1,32], index: 4, kind: input, shape index: {}]
  %s5 = inlined_call_operand.hbm [shape: f32[16,32], index: 5, kind: output, shape index: {}]
  %s6 = sld [smem:[#allocation0]]
  $region53: #{tpu_custom_call.1} parent=0
    _
  %s8 = ssub.s32 1, %s6
  %s9 = scalar_select 0, %s8, %s6
  $region1: #{tpu_custom_call.1} parent=0
    #allocation2 [shape = 'u8[8192]{0}', space=vmem, size = 0x2000, scoped, tag = 'output window, operand 0']
    #allocation3 [shape = 's32[2]{0}', space=sflag, size = 0x8, scoped, tag = 'scoped memory for tpu_custom_call.1']
    %10 = vsyncpa [#allocation3], 0
    %s11 = scalar_lea.sflag [#allocation3], 1
    %12 = vsyncpa %s11, 0
    loop: start=0, step=1, limit=4
    $region2: #{tpu_custom_call.1} parent=1 // loop_pre_header
      _
    $region3: #{tpu_custom_call.1} parent=1 // loop_header
      %s14 = sphi 0, %s18
      %p15 = scmp.ge.s32.totalorder %s14, 4
      %s24 = sphi 0, %s26
      %s27 = sphi 0, %s24
      %s28 = sphi 0, %s27
      %s44 = sphi 0, %s28
      %s48 = sphi 0, %s48
      %s50 = sphi 0, %s48
      %s51 = sphi 0, %s50
      %s65 = sphi 0, %s51
      %s69 = sphi 0, %s69
      %s71 = sphi 0, %s69
      %s72 = sphi 0, %s71
      %s86 = sphi 0, %s72
      %s90 = sphi 0, %s90
      %s92 = sphi 0, %s90
      %s93 = sphi 0, %s92
      %s107 = sphi 0, %s93
      %s111 = sphi 0, %s111
      %s113 = sphi 0, %s111
      %s114 = sphi 0, %s113
      %s128 = sphi 0, %s114
      %s134 = sphi 0, %s136
      %s137 = sphi 0, %s134
      %s138 = sphi 0, %s137
      %s154 = sphi 0, %s138
    $region4: #{tpu_custom_call.1} parent=1 // loop_header_branch
      %17 = sbr.rel (%p15) target = $region8
    $region5: #{tpu_custom_call.1} parent=1 // loop_body
      %s19 = ssub.s32 %s14, 1
      %s20 = ssub.s32 %s14, 2
      %s21 = sadd.s32 %s14, 1
      %s22 = ssub.s32 %s14, %s21
      %p23 = scmp.eq.s32.totalorder %s22, 0
      %s25 = sadd.s32 %s24, 1
      %s26 = scalar_select %p23, %s24, %s25
      %p29 = pneg %p23
      %p30 = scmp.eq.s32.totalorder %s14, 1
      %p31 = por %p29, %p30
      %p32 = scmp.ne.s32.totalorder %s24, %s27
      %p33 = scmp.eq.s32.totalorder %s14, 0
      %p34 = por %p32, %p33
      %p35 = scmp.ne.s32.totalorder %s24, %s27
      %p36 = scmp.eq.s32.totalorder %s19, 1
      %p37 = por %p35, %p36
      %p38 = scmp.ne.s32.totalorder %s27, %s28
      %p39 = scmp.eq.s32.totalorder %s19, 0
      %p40 = por %p38, %p39
      %p41 = scmp.ne.s32.totalorder %s27, %s28
      %p42 = scmp.eq.s32.totalorder %s20, 1
      %p43 = por %p41, %p42
      %p45 = scmp.ne.s32.totalorder %s28, %s44
      %p46 = scmp.eq.s32.totalorder %s20, 0
      %p47 = por %p45, %p46
      %s49 = sadd.s32 %s48, 1
      %p52 = scmp.eq.s32.totalorder %s14, 1
      %p53 = scmp.ne.s32.totalorder %s48, %s50
      %p54 = scmp.eq.s32.totalorder %s14, 0
      %p55 = por %p53, %p54
      %p56 = scmp.ne.s32.totalorder %s48, %s50
      %p57 = scmp.eq.s32.totalorder %s19, 1
      %p58 = por %p56, %p57
      %p59 = scmp.ne.s32.totalorder %s50, %s51
      %p60 = scmp.eq.s32.totalorder %s19, 0
      %p61 = por %p59, %p60
      %p62 = scmp.ne.s32.totalorder %s50, %s51
      %p63 = scmp.eq.s32.totalorder %s20, 1
      %p64 = por %p62, %p63
      %p66 = scmp.ne.s32.totalorder %s51, %s65
      %p67 = scmp.eq.s32.totalorder %s20, 0
      %p68 = por %p66, %p67
      %s70 = sadd.s32 %s69, 1
      %p73 = scmp.eq.s32.totalorder %s14, 1
      %p74 = scmp.ne.s32.totalorder %s69, %s71
      %p75 = scmp.eq.s32.totalorder %s14, 0
      %p76 = por %p74, %p75
      %p77 = scmp.ne.s32.totalorder %s69, %s71
      %p78 = scmp.eq.s32.totalorder %s19, 1
      %p79 = por %p77, %p78
      %p80 = scmp.ne.s32.totalorder %s71, %s72
      %p81 = scmp.eq.s32.totalorder %s19, 0
      %p82 = por %p80, %p81
      %p83 = scmp.ne.s32.totalorder %s71, %s72
      %p84 = scmp.eq.s32.totalorder %s20, 1
      %p85 = por %p83, %p84
      %p87 = scmp.ne.s32.totalorder %s72, %s86
      %p88 = scmp.eq.s32.totalorder %s20, 0
      %p89 = por %p87, %p88
      %s91 = sadd.s32 %s90, 1
      %p94 = scmp.eq.s32.totalorder %s14, 1
      %p95 = scmp.ne.s32.totalorder %s90, %s92
      %p96 = scmp.eq.s32.totalorder %s14, 0
      %p97 = por %p95, %p96
      %p98 = scmp.ne.s32.totalorder %s90, %s92
      %p99 = scmp.eq.s32.totalorder %s19, 1
      %p100 = por %p98, %p99
      %p101 = scmp.ne.s32.totalorder %s92, %s93
      %p102 = scmp.eq.s32.totalorder %s19, 0
      %p103 = por %p101, %p102
      %p104 = scmp.ne.s32.totalorder %s92, %s93
      %p105 = scmp.eq.s32.totalorder %s20, 1
      %p106 = por %p104, %p105
      %p108 = scmp.ne.s32.totalorder %s93, %s107
      %p109 = scmp.eq.s32.totalorder %s20, 0
      %p110 = por %p108, %p109
      %s112 = sadd.s32 %s111, 1
      %p115 = scmp.eq.s32.totalorder %s14, 1
      %p116 = scmp.ne.s32.totalorder %s111, %s113
      %p117 = scmp.eq.s32.totalorder %s14, 0
      %p118 = por %p116, %p117
      %p119 = scmp.ne.s32.totalorder %s111, %s113
      %p120 = scmp.eq.s32.totalorder %s19, 1
      %p121 = por %p119, %p120
      %p122 = scmp.ne.s32.totalorder %s113, %s114
      %p123 = scmp.eq.s32.totalorder %s19, 0
      %p124 = por %p122, %p123
      %p125 = scmp.ne.s32.totalorder %s113, %s114
      %p126 = scmp.eq.s32.totalorder %s20, 1
      %p127 = por %p125, %p126
      %p129 = scmp.ne.s32.totalorder %s114, %s128
      %p130 = scmp.eq.s32.totalorder %s20, 0
      %p131 = por %p129, %p130
      %s132 = ssub.s32 %s14, %s21
      %p133 = scmp.eq.s32.totalorder %s132, 0
      %s135 = sadd.s32 %s134, 1
      %s136 = scalar_select %p133, %s134, %s135
      %p139 = pneg %p133
      %p140 = scmp.eq.s32.totalorder %s14, 1
      %p141 = por %p139, %p140
      %p142 = scmp.ne.s32.totalorder %s134, %s137
      %p143 = scmp.eq.s32.totalorder %s14, 0
      %p144 = por %p142, %p143
      %p145 = scmp.ne.s32.totalorder %s134, %s137
      %p146 = scmp.eq.s32.totalorder %s19, 1
      %p147 = por %p145, %p146
      %p148 = scmp.ne.s32.totalorder %s137, %s138
      %p149 = scmp.eq.s32.totalorder %s19, 0
      %p150 = por %p148, %p149
      %p151 = scmp.ne.s32.totalorder %s137, %s138
      %p152 = scmp.eq.s32.totalorder %s20, 1
      %p153 = por %p151, %p152
      %p155 = scmp.ne.s32.totalorder %s138, %s154
      %p156 = scmp.eq.s32.totalorder %s20, 0
      %p157 = por %p155, %p156
      %p158 = scmp.le.s32.totalorder 1, %s14
      %p159 = scmp.lt.s32.totalorder %s14, 3
      %p160 = pnand %p158, %p159
      %p161 = pneg %p160
      // Predicated region
      $region9: #{tpu_custom_call.1} parent=5 // pred_check
        _
      $region10: #{tpu_custom_call.1} parent=5 // pred_check_branch
        %163 = sbr.rel (%p160) target = $region12
      $region11: #{tpu_custom_call.1} parent=5 // pred_region
        %s164 = ssub.s32 %s14, 1
        // Predicated region
        $region13: #{tpu_custom_call.1} parent=11 // pred_check
          %p165 = pneg %p61
        $region14: #{tpu_custom_call.1} parent=11 // pred_check_branch
          %167 = sbr.rel (%p165) target = $region16
        $region15: #{tpu_custom_call.1} parent=11 // pred_region
          _
        $region16: #{tpu_custom_call.1} parent=11 // pred_fallthru
          _
        // Predicated region
        $region17: #{tpu_custom_call.1} parent=11 // pred_check
          %p168 = pneg %p82
        $region18: #{tpu_custom_call.1} parent=11 // pred_check_branch
          %170 = sbr.rel (%p168) target = $region20
        $region19: #{tpu_custom_call.1} parent=11 // pred_region
          _
        $region20: #{tpu_custom_call.1} parent=11 // pred_fallthru
          _
        // Predicated region
        $region21: #{tpu_custom_call.1} parent=11 // pred_check
          %p171 = pneg %p103
        $region22: #{tpu_custom_call.1} parent=11 // pred_check_branch
          %173 = sbr.rel (%p171) target = $region24
        $region23: #{tpu_custom_call.1} parent=11 // pred_region
          _
        $region24: #{tpu_custom_call.1} parent=11 // pred_fallthru
          _
        // Predicated region
        $region25: #{tpu_custom_call.1} parent=11 // pred_check
          %p174 = pneg %p124
        $region26: #{tpu_custom_call.1} parent=11 // pred_check_branch
          %176 = sbr.rel (%p174) target = $region28
        $region27: #{tpu_custom_call.1} parent=11 // pred_region
          _
        $region28: #{tpu_custom_call.1} parent=11 // pred_fallthru
          _
      $region12: #{tpu_custom_call.1} parent=5 // pred_fallthru
        _
      %p177 = scmp.lt.s32.totalorder %s14, 2
      // Predicated region
      $region29: #{tpu_custom_call.1} parent=5 // pred_check
        %p178 = pneg %p177
      $region30: #{tpu_custom_call.1} parent=5 // pred_check_branch
        %180 = sbr.rel (%p178) target = $region32
      $region31: #{tpu_custom_call.1} parent=5 // pred_region
        // Predicated region
        $region33: #{tpu_custom_call.1} parent=31 // pred_check
          %p181 = pneg %p34
        $region34: #{tpu_custom_call.1} parent=31 // pred_check_branch
          %183 = sbr.rel (%p181) target = $region36
        $region35: #{tpu_custom_call.1} parent=31 // pred_region
          %p184 = scmp.lt.s32.totalorder %s14, 1
          %s185 = scalar_select %p184, %s14, 1
          %s186 = smul.addr %s185, 4
          %s187 = scalar_lea.vmem %s0, %s186
        $region36: #{tpu_custom_call.1} parent=31 // pred_fallthru
          _
      $region32: #{tpu_custom_call.1} parent=5 // pred_fallthru
        _
      %p188 = scmp.le.s32.totalorder 1, %s14
      %p189 = scmp.lt.s32.totalorder %s14, 3
      %p190 = pnand %p188, %p189
      %p191 = pneg %p190
      // Predicated region
      $region37: #{tpu_custom_call.1} parent=5 // pred_check
        _
      $region38: #{tpu_custom_call.1} parent=5 // pred_check_branch
        %193 = sbr.rel (%p190) target = $region40
      $region39: #{tpu_custom_call.1} parent=5 // pred_region
        %s194 = ssub.s32 %s14, 1
        %p195 = scmp.lt.s32.totalorder %s19, 1
        %s196 = scalar_select %p195, %s19, 1
        %s197 = smul.addr %s196, 4
        %s198 = scalar_lea.vmem %s0, %s197
        %p199 = pneg %p40
        %p200 = pneg %p37
        %p201 = pneg %p61
        %p202 = pneg %p58
        %p203 = pneg %p82
        %p204 = pneg %p79
        %p205 = pneg %p103
        %p206 = pneg %p100
        %p207 = pneg %p124
        %p208 = pneg %p121
        %p209 = pneg %p150
        %p210 = pneg %p147
        %s211 = sand.u32 %s137, 1
        %s212 = scalar_lea.sflag [#allocation3], %s211
        %s213 = sand.u32 %s137, 1
        %s214 = smul.addr %s213, 8
        %s215 = scalar_lea.vmem [#allocation2], %s214
        %p216 = scmp.lt.s32.totalorder %s19, 1
        %s217 = scalar_select %p216, %s19, 1
        %s218 = smul.addr %s217, 4
        %s219 = scalar_lea.vmem %s0, %s218
        %v221 = vld [vmem:[%s219] sm:$0xf]
        %v222 = vld [vmem:[%s1] sm:$0xf]
        %v223 = vld [vmem:[%s1 + $0x4] sm:$0xf]
        %v224 = vld [vmem:[%s1 + $0x8] sm:$0xf]
        %v225 = vld [vmem:[%s1 + $0xc] sm:$0xf]
        %v226 = vld [vmem:[%s2] sm:$0x1]
        %v228 = vlaneseq
        %v229 = vshrl.u32 %v228, 7
        %v230 = vsub.s32 0, %v229
        %v231 = vrot.slane %v226, %v230
        %v237 = vunpack.c.l.b16 %v222
        %v238 = vunpack.c.l.b16 %v223
        %v239 = vunpack.c.l.b16 %v224
        %v240 = vunpack.c.l.b16 %v225
        %v241 = vpack.c.b16 %v238, %v237
        %v242 = vpack.c.b16 %v240, %v239
        %vm245 = vcmask 261120
        %v247 = vsel %vm245, %v221, 0
        %249 = vmatprep.subr.bf16.mxu0 0
        %250 = vmatpush1.bf16.msra.mxu0 0
        %251 = vmatprep.subr.bf16.mxu0 0
        %252 = vmatpush1.bf16.msra.mxu0 0
        %253 = vmatprep.subr.bf16.mxu0 0
        %254 = vmatpush1.bf16.msra.mxu0 0
        %255 = vmatprep.subr.bf16.mxu0 0
        %256 = vmatpush1.bf16.msra.mxu0 0
        %257 = vmatprep.subr.bf16.mxu0 0
        %258 = vmatpush1.bf16.msra.mxu0 0
        %259 = vmatprep.subr.bf16.mxu0 0
        %260 = vmatpush1.bf16.msra.mxu0 0
        %261 = vmatprep.subr.bf16.mxu0 0
        %262 = vmatpush1.bf16.msra.mxu0 %v242
        %263 = vmatprep.subr.bf16.mxu0 0
        %264 = vmatpush1.bf16.msra.mxu0 %v241
        %265 = vmatprep.subr.bf16.mxu0 0
        %266 = vmatpush2.bf16.msra.mxu0 0
        %267 = vmatprep.subr.bf16.mxu0 0
        %268 = vmatpush2.bf16.msra.mxu0 0
        %269 = vmatprep.subr.bf16.mxu0 0
        %270 = vmatpush2.bf16.msra.mxu0 0
        %271 = vmatprep.subr.bf16.mxu0 0
        %272 = vmatpush2.bf16.msra.mxu0 0
        %273 = vmatprep.subr.bf16.mxu0 0
        %274 = vmatpush2.bf16.msra.mxu0 0
        %275 = vmatprep.subr.bf16.mxu0 0
        %276 = vmatpush2.bf16.msra.mxu0 0
        %277 = vmatprep.subr.bf16.mxu0 0
        %278 = vmatpush2.bf16.msra.mxu0 0
        %279 = vmatprep.subr.bf16.mxu0 0
        %280 = vmatpush2.bf16.msra.mxu0 0
        %281 = vmatprep.mubr.bf16.mxu0 0
        %282 = vmatmul.mubr.bf16.gmra.mxu0 %v247
        %v283 = vpop.f32.mrf.mxu0
        %v284 = vadd.f32 %v231, %v283
        %v285 = vpop.f32.mrf.mxu0
        %v286 = vpop.f32.mrf.mxu0
        %v287 = vpop.f32.mrf.mxu0
        %288 = vdwg.mxu0
        %v289 = vmul.f32 %v284, %v284
        %v290 = vmul.f32 %v284, 0.7978846
        %v291 = vmul.f32 %v289, 0.044715
        %v292 = vadd.f32 %v291, 1.0
        %v293 = vmul.f32 %v290, %v292
        %v294 = vmul.f32 %v284, 0.5
        %v295 = vtanh.pop %v293
        %v296 = vadd.f32 %v295, 1.0
        %v297 = vmul.f32 %v294, %v296
        %v298 = vpack.c.bf16 %v297, %v297
        %v299 = vld [vmem:[%s3] sm:$0xf]
        %v300 = vld [vmem:[%s3 + $0x4] sm:$0xf]
        %v301 = vld [vmem:[%s3 + $0x8] sm:$0xf]
        %v302 = vld [vmem:[%s3 + $0xc] sm:$0xf]
        %v303 = vld [vmem:[%s3 + $0x10] sm:$0xf]
        %v304 = vld [vmem:[%s3 + $0x14] sm:$0xf]
        %v305 = vld [vmem:[%s3 + $0x18] sm:$0xf]
        %v306 = vld [vmem:[%s3 + $0x1c] sm:$0xf]
        %v307 = vld [vmem:[%s4] sm:$0x1]
        %v309 = vlaneseq
        %v310 = vshrl.u32 %v309, 7
        %v311 = vsub.s32 0, %v310
        %v312 = vrot.slane %v307, %v311
        %v322 = vunpack.c.l.b16 %v299
        %v323 = vunpack.c.l.b16 %v300
        %v324 = vunpack.c.l.b16 %v301
        %v325 = vunpack.c.l.b16 %v302
        %v326 = vunpack.c.l.b16 %v303
        %v327 = vunpack.c.l.b16 %v304
        %v328 = vunpack.c.l.b16 %v305
        %v329 = vunpack.c.l.b16 %v306
        %v330 = vpack.c.b16 %v323, %v322
        %v331 = vpack.c.b16 %v325, %v324
        %v332 = vpack.c.b16 %v327, %v326
        %v333 = vpack.c.b16 %v329, %v328
        %vm338 = vcmask 523264
        %v340 = vsel %vm338, %v298, 0
        %342 = vmatprep.subr.bf16.mxu0 0
        %343 = vmatpush1.bf16.msra.mxu0 0
        %344 = vmatprep.subr.bf16.mxu0 0
        %345 = vmatpush1.bf16.msra.mxu0 0
        %346 = vmatprep.subr.bf16.mxu0 0
        %347 = vmatpush1.bf16.msra.mxu0 0
        %348 = vmatprep.subr.bf16.mxu0 0
        %349 = vmatpush1.bf16.msra.mxu0 0
        %350 = vmatprep.subr.bf16.mxu0 0
        %351 = vmatpush1.bf16.msra.mxu0 %v333
        %352 = vmatprep.subr.bf16.mxu0 0
        %353 = vmatpush1.bf16.msra.mxu0 %v332
        %354 = vmatprep.subr.bf16.mxu0 0
        %355 = vmatpush1.bf16.msra.mxu0 %v331
        %356 = vmatprep.subr.bf16.mxu0 0
        %357 = vmatpush1.bf16.msra.mxu0 %v330
        %358 = vmatprep.subr.bf16.mxu0 0
        %359 = vmatpush2.bf16.msra.mxu0 0
        %360 = vmatprep.subr.bf16.mxu0 0
        %361 = vmatpush2.bf16.msra.mxu0 0
        %362 = vmatprep.subr.bf16.mxu0 0
        %363 = vmatpush2.bf16.msra.mxu0 0
        %364 = vmatprep.subr.bf16.mxu0 0
        %365 = vmatpush2.bf16.msra.mxu0 0
        %366 = vmatprep.subr.bf16.mxu0 0
        %367 = vmatpush2.bf16.msra.mxu0 0
        %368 = vmatprep.subr.bf16.mxu0 0
        %369 = vmatpush2.bf16.msra.mxu0 0
        %370 = vmatprep.subr.bf16.mxu0 0
        %371 = vmatpush2.bf16.msra.mxu0 0
        %372 = vmatprep.subr.bf16.mxu0 0
        %373 = vmatpush2.bf16.msra.mxu0 0
        %374 = vmatprep.mubr.bf16.mxu0 0
        %375 = vmatmul.mubr.bf16.gmra.mxu0 %v340
        %v376 = vpop.f32.mrf.mxu0
        %v377 = vadd.f32 %v312, %v376
        %v378 = vpop.f32.mrf.mxu0
        %v379 = vpop.f32.mrf.mxu0
        %v380 = vpop.f32.mrf.mxu0
        %381 = vdwg.mxu0
        %382 = vst.msk [vmem:[%s215] sm:$0xff] %vm245, %v377
        %s383 = sand.u32 %s137, 1
        %s384 = scalar_lea.sflag [#allocation3], %s383
        %s385 = sand.u32 %s137, 1
        %s386 = smul.addr %s385, 8
        %s387 = scalar_lea.vmem [#allocation2], %s386
        // Predicated region
        $region41: #{tpu_custom_call.1} parent=39 // pred_check
          %p388 = pneg %p147
        $region42: #{tpu_custom_call.1} parent=39 // pred_check_branch
          %390 = sbr.rel (%p388) target = $region44
        $region43: #{tpu_custom_call.1} parent=39 // pred_region
          %s392 = ssub.s32 128, 128
          %393 = vsyncadd %s384, %s392
          %s394 = smul.addr %s19, 128
          %s395 = scalar_lea.hbm %s5, %s394
          %s397 = sshll.u32 %s387, 4
          %s398 = int_to_ptr.vmem [resolvable:$true] %s397
          %400 = dma.vmem_to_hbm [thread:$0]  %s398, 128, %s395, %s384
        $region44: #{tpu_custom_call.1} parent=39 // pred_fallthru
          _
      $region40: #{tpu_custom_call.1} parent=5 // pred_fallthru
        _
      %p401 = scmp.le.s32.totalorder 2, %s14
      // Predicated region
      $region45: #{tpu_custom_call.1} parent=5 // pred_check
        %p402 = pneg %p401
      $region46: #{tpu_custom_call.1} parent=5 // pred_check_branch
        %404 = sbr.rel (%p402) target = $region48
      $region47: #{tpu_custom_call.1} parent=5 // pred_region
        %s405 = ssub.s32 %s14, 2
        // Predicated region
        $region49: #{tpu_custom_call.1} parent=47 // pred_check
          %p406 = pneg %p153
        $region50: #{tpu_custom_call.1} parent=47 // pred_check_branch
          %408 = sbr.rel (%p406) target = $region52
        $region51: #{tpu_custom_call.1} parent=47 // pred_region
          %s409 = sand.u32 %s138, 1
          %s410 = scalar_lea.sflag [#allocation3], %s409
          %s411 = sand.u32 %s138, 1
          %s412 = smul.addr %s411, 8
          %s413 = scalar_lea.vmem [#allocation2], %s412
          %414 = dma.done %s410, 128
        $region52: #{tpu_custom_call.1} parent=47 // pred_fallthru
          _
      $region48: #{tpu_custom_call.1} parent=5 // pred_fallthru
        _
    $region6: #{tpu_custom_call.1} parent=1 // loop_footer
      %s18 = sadd.s32 1, %s14
    $region7: #{tpu_custom_call.1} parent=1 // loop_footer_branch
      %13 = sbr.rel target = $region3
    $region8: #{tpu_custom_call.1} parent=1 // loop_exit
      _
    %415 = vsyncpa [#allocation3], 1
    %s416 = scalar_lea.sflag [#allocation3], 1
    %417 = vsyncpa %s416, 1

// kernel: tpu_custom_call.1
$region0: #{tpu_custom_call.1}
  #allocation0 [shape = 'u32[]', space=smem, size = 0x4, offset = 0x4, fixed_abs, tag = 'smem constant byte address 0x4 - core index']
  #allocation1 [shape = 'u32[144,128]{1,0:T(1,128)}', space=vmem, size = 0x12000, scoped, tag = 'internal scratch']
  %s0 = inlined_call_operand.vmem [shape: bf16[16,32], index: 0, kind: input, shape index: {}]
  %s1 = inlined_call_operand.vmem [shape: bf16[32,64], index: 1, kind: input, shape index: {}]
  %s2 = inlined_call_operand.vmem [shape: f32[1,64], index: 2, kind: input, shape index: {}]
  %s3 = inlined_call_operand.vmem [shape: bf16[64,32], index: 3, kind: input, shape index: {}]
  %s4 = inlined_call_operand.vmem [shape: f32[1,32], index: 4, kind: input, shape index: {}]
  %s5 = inlined_call_operand.hbm [shape: f32[16,32], index: 5, kind: output, shape index: {}]
  %s6 = sld [smem:[#allocation0]]
  $region53: #{tpu_custom_call.1} parent=0
    _
  %s8 = ssub.s32 1, %s6
  %s9 = scalar_select 0, %s8, %s6
  $region1: #{tpu_custom_call.1} parent=0
    #allocation2 [shape = 'u8[8192]{0}', space=vmem, size = 0x2000, scoped, tag = 'output window, operand 0']
    #allocation3 [shape = 's32[2]{0}', space=sflag, size = 0x8, scoped, tag = 'scoped memory for tpu_custom_call.1']
    %10 = vsyncpa [#allocation3], 0
    %s11 = scalar_lea.sflag [#allocation3], 1
    %12 = vsyncpa %s11, 0
    loop: start=0, step=1, limit=4
    $region2: #{tpu_custom_call.1} parent=1 // loop_pre_header
      _
    $region3: #{tpu_custom_call.1} parent=1 // loop_header
      %s14 = sphi 0, %s18
      %p15 = scmp.ge.s32.totalorder %s14, 4
      %s24 = sphi 0, %s26
      %s27 = sphi 0, %s24
      %s28 = sphi 0, %s27
      %s44 = sphi 0, %s28
      %s48 = sphi 0, %s48
      %s50 = sphi 0, %s48
      %s51 = sphi 0, %s50
      %s65 = sphi 0, %s51
      %s69 = sphi 0, %s69
      %s71 = sphi 0, %s69
      %s72 = sphi 0, %s71
      %s86 = sphi 0, %s72
      %s90 = sphi 0, %s90
      %s92 = sphi 0, %s90
      %s93 = sphi 0, %s92
      %s107 = sphi 0, %s93
      %s111 = sphi 0, %s111
      %s113 = sphi 0, %s111
      %s114 = sphi 0, %s113
      %s128 = sphi 0, %s114
      %s134 = sphi 0, %s136
      %s137 = sphi 0, %s134
      %s138 = sphi 0, %s137
      %s154 = sphi 0, %s138
    $region4: #{tpu_custom_call.1} parent=1 // loop_header_branch
      %17 = sbr.rel (%p15) target = $region8
    $region5: #{tpu_custom_call.1} parent=1 // loop_body
      %s19 = ssub.s32 %s14, 1
      %s20 = ssub.s32 %s14, 2
      %s21 = sadd.s32 %s14, 1
      %s22 = ssub.s32 %s14, %s21
      %p23 = scmp.eq.s32.totalorder %s22, 0
      %s25 = sadd.s32 %s24, 1
      %s26 = scalar_select %p23, %s24, %s25
      %p29 = pneg %p23
      %p30 = scmp.eq.s32.totalorder %s14, 1
      %p31 = por %p29, %p30
      %p32 = scmp.ne.s32.totalorder %s24, %s27
      %p33 = scmp.eq.s32.totalorder %s14, 0
      %p34 = por %p32, %p33
      %p35 = scmp.ne.s32.totalorder %s24, %s27
      %p36 = scmp.eq.s32.totalorder %s19, 1
      %p37 = por %p35, %p36
      %p38 = scmp.ne.s32.totalorder %s27, %s28
      %p39 = scmp.eq.s32.totalorder %s19, 0
      %p40 = por %p38, %p39
      %p41 = scmp.ne.s32.totalorder %s27, %s28
      %p42 = scmp.eq.s32.totalorder %s20, 1
      %p43 = por %p41, %p42
      %p45 = scmp.ne.s32.totalorder %s28, %s44
      %p46 = scmp.eq.s32.totalorder %s20, 0
      %p47 = por %p45, %p46
      %s49 = sadd.s32 %s48, 1
      %p52 = scmp.eq.s32.totalorder %s14, 1
      %p53 = scmp.ne.s32.totalorder %s48, %s50
      %p54 = scmp.eq.s32.totalorder %s14, 0
      %p55 = por %p53, %p54
      %p56 = scmp.ne.s32.totalorder %s48, %s50
      %p57 = scmp.eq.s32.totalorder %s19, 1
      %p58 = por %p56, %p57
      %p59 = scmp.ne.s32.totalorder %s50, %s51
      %p60 = scmp.eq.s32.totalorder %s19, 0
      %p61 = por %p59, %p60
      %p62 = scmp.ne.s32.totalorder %s50, %s51
      %p63 = scmp.eq.s32.totalorder %s20, 1
      %p64 = por %p62, %p63
      %p66 = scmp.ne.s32.totalorder %s51, %s65
      %p67 = scmp.eq.s32.totalorder %s20, 0
      %p68 = por %p66, %p67
      %s70 = sadd.s32 %s69, 1
      %p73 = scmp.eq.s32.totalorder %s14, 1
      %p74 = scmp.ne.s32.totalorder %s69, %s71
      %p75 = scmp.eq.s32.totalorder %s14, 0
      %p76 = por %p74, %p75
      %p77 = scmp.ne.s32.totalorder %s69, %s71
      %p78 = scmp.eq.s32.totalorder %s19, 1
      %p79 = por %p77, %p78
      %p80 = scmp.ne.s32.totalorder %s71, %s72
      %p81 = scmp.eq.s32.totalorder %s19, 0
      %p82 = por %p80, %p81
      %p83 = scmp.ne.s32.totalorder %s71, %s72
      %p84 = scmp.eq.s32.totalorder %s20, 1
      %p85 = por %p83, %p84
      %p87 = scmp.ne.s32.totalorder %s72, %s86
      %p88 = scmp.eq.s32.totalorder %s20, 0
      %p89 = por %p87, %p88
      %s91 = sadd.s32 %s90, 1
      %p94 = scmp.eq.s32.totalorder %s14, 1
      %p95 = scmp.ne.s32.totalorder %s90, %s92
      %p96 = scmp.eq.s32.totalorder %s14, 0
      %p97 = por %p95, %p96
      %p98 = scmp.ne.s32.totalorder %s90, %s92
      %p99 = scmp.eq.s32.totalorder %s19, 1
      %p100 = por %p98, %p99
      %p101 = scmp.ne.s32.totalorder %s92, %s93
      %p102 = scmp.eq.s32.totalorder %s19, 0
      %p103 = por %p101, %p102
      %p104 = scmp.ne.s32.totalorder %s92, %s93
      %p105 = scmp.eq.s32.totalorder %s20, 1
      %p106 = por %p104, %p105
      %p108 = scmp.ne.s32.totalorder %s93, %s107
      %p109 = scmp.eq.s32.totalorder %s20, 0
      %p110 = por %p108, %p109
      %s112 = sadd.s32 %s111, 1
      %p115 = scmp.eq.s32.totalorder %s14, 1
      %p116 = scmp.ne.s32.totalorder %s111, %s113
      %p117 = scmp.eq.s32.totalorder %s14, 0
      %p118 = por %p116, %p117
      %p119 = scmp.ne.s32.totalorder %s111, %s113
      %p120 = scmp.eq.s32.totalorder %s19, 1
      %p121 = por %p119, %p120
      %p122 = scmp.ne.s32.totalorder %s113, %s114
      %p123 = scmp.eq.s32.totalorder %s19, 0
      %p124 = por %p122, %p123
      %p125 = scmp.ne.s32.totalorder %s113, %s114
      %p126 = scmp.eq.s32.totalorder %s20, 1
      %p127 = por %p125, %p126
      %p129 = scmp.ne.s32.totalorder %s114, %s128
      %p130 = scmp.eq.s32.totalorder %s20, 0
      %p131 = por %p129, %p130
      %s132 = ssub.s32 %s14, %s21
      %p133 = scmp.eq.s32.totalorder %s132, 0
      %s135 = sadd.s32 %s134, 1
      %s136 = scalar_select %p133, %s134, %s135
      %p139 = pneg %p133
      %p140 = scmp.eq.s32.totalorder %s14, 1
      %p141 = por %p139, %p140
      %p142 = scmp.ne.s32.totalorder %s134, %s137
      %p143 = scmp.eq.s32.totalorder %s14, 0
      %p144 = por %p142, %p143
      %p145 = scmp.ne.s32.totalorder %s134, %s137
      %p146 = scmp.eq.s32.totalorder %s19, 1
      %p147 = por %p145, %p146
      %p148 = scmp.ne.s32.totalorder %s137, %s138
      %p149 = scmp.eq.s32.totalorder %s19, 0
      %p150 = por %p148, %p149
      %p151 = scmp.ne.s32.totalorder %s137, %s138
      %p152 = scmp.eq.s32.totalorder %s20, 1
      %p153 = por %p151, %p152
      %p155 = scmp.ne.s32.totalorder %s138, %s154
      %p156 = scmp.eq.s32.totalorder %s20, 0
      %p157 = por %p155, %p156
      %p158 = scmp.le.s32.totalorder 1, %s14
      %p159 = scmp.lt.s32.totalorder %s14, 3
      %p160 = pnand %p158, %p159
      %p161 = pneg %p160
      // Predicated region
      $region9: #{tpu_custom_call.1} parent=5 // pred_check
        _
      $region10: #{tpu_custom_call.1} parent=5 // pred_check_branch
        %163 = sbr.rel (%p160) target = $region12
      $region11: #{tpu_custom_call.1} parent=5 // pred_region
        %s164 = ssub.s32 %s14, 1
        // Predicated region
        $region13: #{tpu_custom_call.1} parent=11 // pred_check
          %p165 = pneg %p61
        $region14: #{tpu_custom_call.1} parent=11 // pred_check_branch
          %167 = sbr.rel (%p165) target = $region16
        $region15: #{tpu_custom_call.1} parent=11 // pred_region
          _
        $region16: #{tpu_custom_call.1} parent=11 // pred_fallthru
          _
        // Predicated region
        $region17: #{tpu_custom_call.1} parent=11 // pred_check
          %p168 = pneg %p82
        $region18: #{tpu_custom_call.1} parent=11 // pred_check_branch
          %170 = sbr.rel (%p168) target = $region20
        $region19: #{tpu_custom_call.1} parent=11 // pred_region
          _
        $region20: #{tpu_custom_call.1} parent=11 // pred_fallthru
          _
        // Predicated region
        $region21: #{tpu_custom_call.1} parent=11 // pred_check
          %p171 = pneg %p103
        $region22: #{tpu_custom_call.1} parent=11 // pred_check_branch
          %173 = sbr.rel (%p171) target = $region24
        $region23: #{tpu_custom_call.1} parent=11 // pred_region
          _
        $region24: #{tpu_custom_call.1} parent=11 // pred_fallthru
          _
        // Predicated region
        $region25: #{tpu_custom_call.1} parent=11 // pred_check
          %p174 = pneg %p124
        $region26: #{tpu_custom_call.1} parent=11 // pred_check_branch
          %176 = sbr.rel (%p174) target = $region28
        $region27: #{tpu_custom_call.1} parent=11 // pred_region
          _
        $region28: #{tpu_custom_call.1} parent=11 // pred_fallthru
          _
      $region12: #{tpu_custom_call.1} parent=5 // pred_fallthru
        _
      %p177 = scmp.lt.s32.totalorder %s14, 2
      // Predicated region
      $region29: #{tpu_custom_call.1} parent=5 // pred_check
        %p178 = pneg %p177
      $region30: #{tpu_custom_call.1} parent=5 // pred_check_branch
        %180 = sbr.rel (%p178) target = $region32
      $region31: #{tpu_custom_call.1} parent=5 // pred_region
        // Predicated region
        $region33: #{tpu_custom_call.1} parent=31 // pred_check
          %p181 = pneg %p34
        $region34: #{tpu_custom_call.1} parent=31 // pred_check_branch
          %183 = sbr.rel (%p181) target = $region36
        $region35: #{tpu_custom_call.1} parent=31 // pred_region
          %p184 = scmp.lt.s32.totalorder %s14, 1
          %s185 = scalar_select %p184, %s14, 1
          %s186 = smul.addr %s185, 4
          %s187 = scalar_lea.vmem %s0, %s186
        $region36: #{tpu_custom_call.1} parent=31 // pred_fallthru
          _
      $region32: #{tpu_custom_call.1} parent=5 // pred_fallthru
        _
      %p188 = scmp.le.s32.totalorder 1, %s14
      %p189 = scmp.lt.s32.totalorder %s14, 3
      %p190 = pnand %p188, %p189
      %p191 = pneg %p190
      // Predicated region
      $region37: #{tpu_custom_call.1} parent=5 // pred_check
        _
      $region38: #{tpu_custom_call.1} parent=5 // pred_check_branch
        %193 = sbr.rel (%p190) target = $region40
      $region39: #{tpu_custom_call.1} parent=5 // pred_region
        %s194 = ssub.s32 %s14, 1
        %p195 = scmp.lt.s32.totalorder %s19, 1
        %s196 = scalar_select %p195, %s19, 1
        %s197 = smul.addr %s196, 4
        %s198 = scalar_lea.vmem %s0, %s197
        %p199 = pneg %p40
        %p200 = pneg %p37
        %p201 = pneg %p61
        %p202 = pneg %p58
        %p203 = pneg %p82
        %p204 = pneg %p79
        %p205 = pneg %p103
        %p206 = pneg %p100
        %p207 = pneg %p124
        %p208 = pneg %p121
        %p209 = pneg %p150
        %p210 = pneg %p147
        %s211 = sand.u32 %s137, 1
        %s212 = scalar_lea.sflag [#allocation3], %s211
        %s213 = sand.u32 %s137, 1
        %s214 = smul.addr %s213, 8
        %s215 = scalar_lea.vmem [#allocation2], %s214
        %p216 = scmp.lt.s32.totalorder %s19, 1
        %s217 = scalar_select %p216, %s19, 1
        %s218 = smul.addr %s217, 4
        %s219 = scalar_lea.vmem %s0, %s218
        %v221 = vld [vmem:[%s219] sm:$0xf]
        %v222 = vld [vmem:[%s1] sm:$0xf]
        %v223 = vld [vmem:[%s1 + $0x4] sm:$0xf]
        %v224 = vld [vmem:[%s1 + $0x8] sm:$0xf]
        %v225 = vld [vmem:[%s1 + $0xc] sm:$0xf]
        %v226 = vld [vmem:[%s2] sm:$0x1]
        %v228 = vlaneseq
        %v229 = vshrl.u32 %v228, 7
        %v230 = vsub.s32 0, %v229
        %v231 = vrot.slane %v226, %v230
        %v237 = vunpack.c.l.b16 %v222
        %v238 = vunpack.c.l.b16 %v223
        %v239 = vunpack.c.l.b16 %v224
        %v240 = vunpack.c.l.b16 %v225
        %v241 = vpack.c.b16 %v238, %v237
        %v242 = vpack.c.b16 %v240, %v239
        %vm245 = vcmask 261120
        %v247 = vsel %vm245, %v221, 0
        %249 = vmatprep.subr.bf16.mxu0 0
        %250 = vmatpush1.bf16.msra.mxu0 0
        %251 = vmatprep.subr.bf16.mxu0 0
        %252 = vmatpush1.bf16.msra.mxu0 0
        %253 = vmatprep.subr.bf16.mxu0 0
        %254 = vmatpush1.bf16.msra.mxu0 0
        %255 = vmatprep.subr.bf16.mxu0 0
        %256 = vmatpush1.bf16.msra.mxu0 0
        %257 = vmatprep.subr.bf16.mxu0 0
        %258 = vmatpush1.bf16.msra.mxu0 0
        %259 = vmatprep.subr.bf16.mxu0 0
        %260 = vmatpush1.bf16.msra.mxu0 0
        %261 = vmatprep.subr.bf16.mxu0 0
        %262 = vmatpush1.bf16.msra.mxu0 %v242
        %263 = vmatprep.subr.bf16.mxu0 0
        %264 = vmatpush1.bf16.msra.mxu0 %v241
        %265 = vmatprep.subr.bf16.mxu0 0
        %266 = vmatpush2.bf16.msra.mxu0 0
        %267 = vmatprep.subr.bf16.mxu0 0
        %268 = vmatpush2.bf16.msra.mxu0 0
        %269 = vmatprep.subr.bf16.mxu0 0
        %270 = vmatpush2.bf16.msra.mxu0 0
        %271 = vmatprep.subr.bf16.mxu0 0
        %272 = vmatpush2.bf16.msra.mxu0 0
        %273 = vmatprep.subr.bf16.mxu0 0
        %274 = vmatpush2.bf16.msra.mxu0 0
        %275 = vmatprep.subr.bf16.mxu0 0
        %276 = vmatpush2.bf16.msra.mxu0 0
        %277 = vmatprep.subr.bf16.mxu0 0
        %278 = vmatpush2.bf16.msra.mxu0 0
        %279 = vmatprep.subr.bf16.mxu0 0
        %280 = vmatpush2.bf16.msra.mxu0 0
        %281 = vmatprep.mubr.bf16.mxu0 0
        %282 = vmatmul.mubr.bf16.gmra.mxu0 %v247
        %v283 = vpop.f32.mrf.mxu0
        %v284 = vadd.f32 %v231, %v283
        %v285 = vpop.f32.mrf.mxu0
        %v286 = vpop.f32.mrf.mxu0
        %v287 = vpop.f32.mrf.mxu0
        %288 = vdwg.mxu0
        %v289 = vmul.f32 %v284, %v284
        %v290 = vmul.f32 %v284, 0.7978846
        %v291 = vmul.f32 %v289, 0.044715
        %v292 = vadd.f32 %v291, 1.0
        %v293 = vmul.f32 %v290, %v292
        %v294 = vmul.f32 %v284, 0.5
        %v295 = vtanh.pop %v293
        %v296 = vadd.f32 %v295, 1.0
        %v297 = vmul.f32 %v294, %v296
        %v298 = vpack.c.bf16 %v297, %v297
        %v299 = vld [vmem:[%s3] sm:$0xf]
        %v300 = vld [vmem:[%s3 + $0x4] sm:$0xf]
        %v301 = vld [vmem:[%s3 + $0x8] sm:$0xf]
        %v302 = vld [vmem:[%s3 + $0xc] sm:$0xf]
        %v303 = vld [vmem:[%s3 + $0x10] sm:$0xf]
        %v304 = vld [vmem:[%s3 + $0x14] sm:$0xf]
        %v305 = vld [vmem:[%s3 + $0x18] sm:$0xf]
        %v306 = vld [vmem:[%s3 + $0x1c] sm:$0xf]
        %v307 = vld [vmem:[%s4] sm:$0x1]
        %v309 = vlaneseq
        %v310 = vshrl.u32 %v309, 7
        %v311 = vsub.s32 0, %v310
        %v312 = vrot.slane %v307, %v311
        %v322 = vunpack.c.l.b16 %v299
        %v323 = vunpack.c.l.b16 %v300
        %v324 = vunpack.c.l.b16 %v301
        %v325 = vunpack.c.l.b16 %v302
        %v326 = vunpack.c.l.b16 %v303
        %v327 = vunpack.c.l.b16 %v304
        %v328 = vunpack.c.l.b16 %v305
        %v329 = vunpack.c.l.b16 %v306
        %v330 = vpack.c.b16 %v323, %v322
        %v331 = vpack.c.b16 %v325, %v324
        %v332 = vpack.c.b16 %v327, %v326
        %v333 = vpack.c.b16 %v329, %v328
        %vm338 = vcmask 523264
        %v340 = vsel %vm338, %v298, 0
        %342 = vmatprep.subr.bf16.mxu0 0
        %343 = vmatpush1.bf16.msra.mxu0 0
        %344 = vmatprep.subr.bf16.mxu0 0
        %345 = vmatpush1.bf16.msra.mxu0 0
        %346 = vmatprep.subr.bf16.mxu0 0
        %347 = vmatpush1.bf16.msra.mxu0 0
        %348 = vmatprep.subr.bf16.mxu0 0
        %349 = vmatpush1.bf16.msra.mxu0 0
        %350 = vmatprep.subr.bf16.mxu0 0
        %351 = vmatpush1.bf16.msra.mxu0 %v333
        %352 = vmatprep.subr.bf16.mxu0 0
        %353 = vmatpush1.bf16.msra.mxu0 %v332
        %354 = vmatprep.subr.bf16.mxu0 0
        %355 = vmatpush1.bf16.msra.mxu0 %v331
        %356 = vmatprep.subr.bf16.mxu0 0
        %357 = vmatpush1.bf16.msra.mxu0 %v330
        %358 = vmatprep.subr.bf16.mxu0 0
        %359 = vmatpush2.bf16.msra.mxu0 0
        %360 = vmatprep.subr.bf16.mxu0 0
        %361 = vmatpush2.bf16.msra.mxu0 0
        %362 = vmatprep.subr.bf16.mxu0 0
        %363 = vmatpush2.bf16.msra.mxu0 0
        %364 = vmatprep.subr.bf16.mxu0 0
        %365 = vmatpush2.bf16.msra.mxu0 0
        %366 = vmatprep.subr.bf16.mxu0 0
        %367 = vmatpush2.bf16.msra.mxu0 0
        %368 = vmatprep.subr.bf16.mxu0 0
        %369 = vmatpush2.bf16.msra.mxu0 0
        %370 = vmatprep.subr.bf16.mxu0 0
        %371 = vmatpush2.bf16.msra.mxu0 0
        %372 = vmatprep.subr.bf16.mxu0 0
        %373 = vmatpush2.bf16.msra.mxu0 0
        %374 = vmatprep.mubr.bf16.mxu0 0
        %375 = vmatmul.mubr.bf16.gmra.mxu0 %v340
        %v376 = vpop.f32.mrf.mxu0
        %v377 = vadd.f32 %v312, %v376
        %v378 = vpop.f32.mrf.mxu0
        %v379 = vpop.f32.mrf.mxu0
        %v380 = vpop.f32.mrf.mxu0
        %381 = vdwg.mxu0
        %382 = vst.msk [vmem:[%s215] sm:$0xff] %vm245, %v377
        %s383 = sand.u32 %s137, 1
        %s384 = scalar_lea.sflag [#allocation3], %s383
        %s385 = sand.u32 %s137, 1
        %s386 = smul.addr %s385, 8
        %s387 = scalar_lea.vmem [#allocation2], %s386
        // Predicated region
        $region41: #{tpu_custom_call.1} parent=39 // pred_check
          %p388 = pneg %p147
        $region42: #{tpu_custom_call.1} parent=39 // pred_check_branch
          %390 = sbr.rel (%p388) target = $region44
        $region43: #{tpu_custom_call.1} parent=39 // pred_region
          %s392 = ssub.s32 128, 128
          %393 = vsyncadd %s384, %s392
          %s394 = smul.addr %s19, 128
          %s395 = scalar_lea.hbm %s5, %s394
          %s397 = sshll.u32 %s387, 4
          %s398 = int_to_ptr.vmem [resolvable:$true] %s397
          %400 = dma.vmem_to_hbm [thread:$0]  %s398, 128, %s395, %s384
        $region44: #{tpu_custom_call.1} parent=39 // pred_fallthru
          _
      $region40: #{tpu_custom_call.1} parent=5 // pred_fallthru
        _
      %p401 = scmp.le.s32.totalorder 2, %s14
      // Predicated region
      $region45: #{tpu_custom_call.1} parent=5 // pred_check
        %p402 = pneg %p401
      $region46: #{tpu_custom_call.1} parent=5 // pred_check_branch
        %404 = sbr.rel (%p402) target = $region48
      $region47: #{tpu_custom_call.1} parent=5 // pred_region
        %s405 = ssub.s32 %s14, 2
        // Predicated region
        $region49: #{tpu_custom_call.1} parent=47 // pred_check
          %p406 = pneg %p153
        $region50: #{tpu_custom_call.1} parent=47 // pred_check_branch
          %408 = sbr.rel (%p406) target = $region52
        $region51: #{tpu_custom_call.1} parent=47 // pred_region
          %s409 = sand.u32 %s138, 1
          %s410 = scalar_lea.sflag [#allocation3], %s409
          %s411 = sand.u32 %s138, 1
          %s412 = smul.addr %s411, 8
          %s413 = scalar_lea.vmem [#allocation2], %s412
          %414 = dma.done %s410, 128
        $region52: #{tpu_custom_call.1} parent=47 // pred_fallthru
          _
      $region48: #{tpu_custom_call.1} parent=5 // pred_fallthru
        _
    $region6: #{tpu_custom_call.1} parent=1 // loop_footer
      %s18 = sadd.s32 1, %s14
    $region7: #{tpu_custom_call.1} parent=1 // loop_footer_branch
      %13 = sbr.rel target = $region3
    $region8: #{tpu_custom_call.1} parent=1 // loop_exit
      _
    %415 = vsyncpa [#allocation3], 1
    %s416 = scalar_lea.sflag [#allocation3], 1
    %417 = vsyncpa %s416, 1

</llo_original>
